<compile_context>
chip_gen: v7x
topology: tpu7x:2x2x1
jax: 0.10.0
libtpu: 0.0.40
codegen_flags: <defaults>
</compile_context>

<pallas_src>
import functools

import jax
import jax.numpy as jnp
from jax.experimental import pallas as pl
from jax.experimental.pallas import tpu as pltpu


def _round_up(n: int, m: int) -> int:
    return ((n + m - 1) // m) * m


def _dqn_kernel(x_ref, w1_ref, w2_ref, wh1_ref, wh2_ref, b_ref, q_ref,
                *, h_p, hh_p, o_p):
    """Fused dueling-DQN forward on one (tb, *) batch tile.

    The dueling combine is pre-folded into wh2 / bias row 3, so the body is
    four bf16 matmuls with f32 accumulation and f32 bias + ReLU between them.
    Output columns [action_size, o_p) are don't-care (sliced off by the wrapper).
    """
    x = x_ref[...]                                                     # bf16 (tb, s)

    h1 = jnp.dot(x, w1_ref[...], preferred_element_type=jnp.float32)
    h1 = jnp.maximum(h1 + b_ref[0:1, :h_p], 0.0).astype(jnp.bfloat16)

    h2 = jnp.dot(h1, w2_ref[...], preferred_element_type=jnp.float32)
    h2 = jnp.maximum(h2 + b_ref[1:2, :h_p], 0.0).astype(jnp.bfloat16)

    # fused head hidden: [value_hidden | advantage_hidden]
    h3 = jnp.dot(h2, wh1_ref[...], preferred_element_type=jnp.float32)
    h3 = jnp.maximum(h3 + b_ref[2:3, :hh_p], 0.0).astype(jnp.bfloat16)

    # fused head output with the dueling combine folded into the weights/bias
    q = jnp.dot(h3, wh2_ref[...], preferred_element_type=jnp.float32) + b_ref[3:4, :o_p]
    q_ref[...] = q.astype(q_ref.dtype)


def pack_params(p, state_size, hidden_size, action_size):
    """Fuse, fold the dueling combine, zero-pad, and cast params for the kernel."""
    half = hidden_size // 2
    h_p = _round_up(hidden_size, 128)
    hh_p = _round_up(2 * half, 128)
    o_p = _round_up(action_size, 128)
    p_max = max(h_p, hh_p, o_p)

    w1 = jnp.zeros((state_size, h_p), jnp.float32).at[:, :hidden_size].set(p["w1"])
    w2 = jnp.zeros((h_p, h_p), jnp.float32).at[:hidden_size, :hidden_size].set(p["w2"])

    # head hidden: [wv1 | wa1] -> one (h_p, hh_p) matmul + ReLU
    wh1 = jnp.zeros((h_p, hh_p), jnp.float32)
    wh1 = wh1.at[:hidden_size, :half].set(p["wv1"])
    wh1 = wh1.at[:hidden_size, half:2 * half].set(p["wa1"])

    # head output with dueling combine folded in:
    #   q[:, j] = h3_v @ wv2 + h3_a @ (wa2[:, j] - mean_k wa2[:, k])
    #             + (bv2 + ba2[j] - mean(ba2))
    wa2_centered = p["wa2"] - jnp.mean(p["wa2"], axis=1, keepdims=True)      # (half, A)
    wh2 = jnp.zeros((hh_p, o_p), jnp.float32)
    wh2 = wh2.at[:half, :action_size].set(
        jnp.broadcast_to(p["wv2"], (half, action_size)))
    wh2 = wh2.at[half:2 * half, :action_size].set(wa2_centered)

    biases = jnp.zeros((8, p_max), jnp.float32)                              # (8,128)-aligned
    biases = biases.at[0, :hidden_size].set(p["b1"][0])
    biases = biases.at[1, :hidden_size].set(p["b2"][0])
    biases = biases.at[2, :half].set(p["bv1"][0])
    biases = biases.at[2, half:2 * half].set(p["ba1"][0])
    b_out = p["bv2"][0, 0] + p["ba2"][0] - jnp.mean(p["ba2"][0])
    biases = biases.at[3, :action_size].set(b_out)

    packed = dict(
        w1=w1.astype(jnp.bfloat16),
        w2=w2.astype(jnp.bfloat16),
        wh1=wh1.astype(jnp.bfloat16),
        wh2=wh2.astype(jnp.bfloat16),
        biases=biases,                                                       # f32
    )
    dims = dict(state_size=state_size, hidden_size=hidden_size, action_size=action_size,
                h_p=h_p, hh_p=hh_p, o_p=o_p, p_max=p_max)
    return packed, dims


def dqn_pricing_forward(x, packed, dims, *, block_batch=1024):
    """Batch-tiled pallas_call; weights VMEM-resident, x/q pipelined over the grid."""
    batch = x.shape[0]
    s = dims["state_size"]
    a = dims["action_size"]
    h_p, hh_p, o_p, p_max = (dims[k] for k in ("h_p", "hh_p", "o_p", "p_max"))

    # Batch tile: multiple of 16 (bf16 sublane packing), large (cuts grid-step
    # overhead), but capped so (a) the grid has >= 2 steps when the batch allows
    # (v7x has 2 TensorCores sharding the "parallel" axis) and (b) batch-pad waste
    # is small (no full-tile blow-up at the boundary).
    tile_mult = 16
    tb = min(_round_up(block_batch, tile_mult),
             _round_up(pl.cdiv(batch, 2), tile_mult))
    tb = max(tb, tile_mult)
    b_p = _round_up(batch, tb)

    x_bf = x.astype(jnp.bfloat16)
    if b_p != batch:
        x_bf = jnp.pad(x_bf, ((0, b_p - batch), (0, 0)))   # pad batch rows only

    kernel = functools.partial(_dqn_kernel, h_p=h_p, hh_p=hh_p, o_p=o_p)

    q_p = pl.pallas_call(
        kernel,
        out_shape=jax.ShapeDtypeStruct((b_p, o_p), jnp.bfloat16),
        grid=(b_p // tb,),
        in_specs=[
            pl.BlockSpec((tb, s), lambda i: (i, 0)),        # x: tiled over batch, feature dim unpadded
            pl.BlockSpec((s, h_p), lambda i: (0, 0)),       # weights: VMEM-resident
            pl.BlockSpec((h_p, h_p), lambda i: (0, 0)),
            pl.BlockSpec((h_p, hh_p), lambda i: (0, 0)),
            pl.BlockSpec((hh_p, o_p), lambda i: (0, 0)),
            pl.BlockSpec((8, p_max), lambda i: (0, 0)),     # packed biases (single DMA)
        ],
        out_specs=pl.BlockSpec((tb, o_p), lambda i: (i, 0)),
        compiler_params=pltpu.CompilerParams(
            dimension_semantics=("parallel",)),
    )(x_bf, packed["w1"], packed["w2"], packed["wh1"], packed["wh2"], packed["biases"])

    return q_p[:batch, :a].astype(jnp.float32)


def init_params(key, state_size, action_size, hidden_size=128):
    """PyTorch-style init U(-1/sqrt(fan_in), 1/sqrt(fan_in)); weights stored (in, out)."""
    def linear(key, fan_in, fan_out):
        kw, kb = jax.random.split(key)
        bound = 1.0 / jnp.sqrt(float(fan_in))
        w = jax.random.uniform(kw, (fan_in, fan_out), jnp.float32, -bound, bound)
        b = jax.random.uniform(kb, (1, fan_out), jnp.float32, -bound, bound)
        return w, b

    half = hidden_size // 2
    keys = jax.random.split(key, 6)
    w1, b1 = linear(keys[0], state_size, hidden_size)
    w2, b2 = linear(keys[1], hidden_size, hidden_size)
    wv1, bv1 = linear(keys[2], hidden_size, half)
    wv2, bv2 = linear(keys[3], half, 1)
    wa1, ba1 = linear(keys[4], hidden_size, half)
    wa2, ba2 = linear(keys[5], half, action_size)
    return dict(w1=w1, b1=b1, w2=w2, b2=b2,
                wv1=wv1, bv1=bv1, wv2=wv2, bv2=bv2,
                wa1=wa1, ba1=ba1, wa2=wa2, ba2=ba2)


def reference_forward(x, p):
    """Pure-JAX f32 reference of the same dueling forward (unfused, unpadded)."""
    h1 = jnp.maximum(x @ p["w1"] + p["b1"], 0.0)
    h2 = jnp.maximum(h1 @ p["w2"] + p["b2"], 0.0)
    v = jnp.maximum(h2 @ p["wv1"] + p["bv1"], 0.0) @ p["wv2"] + p["bv2"]
    a = jnp.maximum(h2 @ p["wa1"] + p["ba1"], 0.0) @ p["wa2"] + p["ba2"]
    return v + (a - a.mean(axis=1, keepdims=True))


def _check(key, state_size, action_size, hidden_size, batch):
    k_params, k_x = jax.random.split(key)
    params = init_params(k_params, state_size, action_size, hidden_size)
    packed, dims = pack_params(params, state_size, hidden_size, action_size)
    x = jax.random.normal(k_x, (batch, state_size), dtype=jnp.float32)

    q = dqn_pricing_forward(x, packed, dims)
    q = jax.block_until_ready(q)

    q_ref = reference_forward(x, params)
    assert q.shape == (batch, action_size), q.shape
    # bf16 operands on the MXU path -> looser tolerance vs. the f32 reference.
    assert jnp.allclose(q, q_ref, atol=5e-2, rtol=5e-2), "mismatch vs reference"


if __name__ == "__main__":
    key = jax.random.PRNGKey(0)
    k1, k2 = jax.random.split(key)

    # Small demo shapes (single batch tile, grid of 1).
    _check(k1, state_size=16, action_size=8, hidden_size=32, batch=8)

    # Multi-tile batch grid with a non-divisible batch (exercises the pipelined path
    # and the adaptive tile choice: 300 -> tb=160, grid=2, only 20 pad rows).
    _check(k2, state_size=16, action_size=8, hidden_size=128, batch=300)

    print("KERNEL_OK")
</pallas_src>

<mosaic_0001>
module attributes {stable_mosaic.version = 11 : i64} {
  func.func @_dqn_kernel(%arg0: i32, %arg1: memref<16x16xbf16, #tpu.memory_space<vmem>>, %arg2: memref<16x128xbf16, #tpu.memory_space<vmem>>, %arg3: memref<128x128xbf16, #tpu.memory_space<vmem>>, %arg4: memref<128x128xbf16, #tpu.memory_space<vmem>>, %arg5: memref<128x128xbf16, #tpu.memory_space<vmem>>, %arg6: memref<8x128xf32, #tpu.memory_space<vmem>>, %arg7: memref<16x128xbf16, #tpu.memory_space<vmem>>) attributes {dimension_semantics = [#tpu.dimension_semantics<parallel>], iteration_bounds = array<i64: 1>, scalar_prefetch = 0 : i64, scratch_operands = 0 : i64, tpu.core_type = #tpu.core_type<tc>, window_params = [{transform_indices = @transform_0, window_bounds = array<i64: 16, 16>}, {pipeline_mode = #tpu.pipeline_mode<synchronous>, transform_indices = @transform_1, window_bounds = array<i64: 16, 128>}, {pipeline_mode = #tpu.pipeline_mode<synchronous>, transform_indices = @transform_2, window_bounds = array<i64: 128, 128>}, {pipeline_mode = #tpu.pipeline_mode<synchronous>, transform_indices = @transform_3, window_bounds = array<i64: 128, 128>}, {pipeline_mode = #tpu.pipeline_mode<synchronous>, transform_indices = @transform_4, window_bounds = array<i64: 128, 128>}, {pipeline_mode = #tpu.pipeline_mode<synchronous>, transform_indices = @transform_5, window_bounds = array<i64: 8, 128>}, {transform_indices = @transform_6, window_bounds = array<i64: 16, 128>}]} {
    %c0 = arith.constant 0 : index
    %c0_0 = arith.constant 0 : index
    %0 = vector.load %arg1[%c0, %c0_0] : memref<16x16xbf16, #tpu.memory_space<vmem>>, vector<16x16xbf16>
    %c0_1 = arith.constant 0 : index
    %c0_2 = arith.constant 0 : index
    %1 = vector.load %arg2[%c0_1, %c0_2] : memref<16x128xbf16, #tpu.memory_space<vmem>>, vector<16x128xbf16>
    %cst = arith.constant dense<0.000000e+00> : vector<16x128xf32>
    %2 = tpu.matmul %0, %1, %cst {dimension_numbers = #tpu.dot_dimension_numbers<[1], [0], [0], [1], [0, 0, 1, 1], [], []>} : vector<16x16xbf16>, vector<16x128xbf16>, vector<16x128xf32> -> vector<16x128xf32>
    %c0_3 = arith.constant 0 : index
    %c0_4 = arith.constant 0 : index
    %3 = vector.load %arg6[%c0_3, %c0_4] : memref<8x128xf32, #tpu.memory_space<vmem>>, vector<1x128xf32>
    %4 = vector.broadcast %3 : vector<1x128xf32> to vector<16x128xf32>
    %5 = arith.addf %2, %4 : vector<16x128xf32>
    %cst_5 = arith.constant 0.000000e+00 : f32
    %6 = vector.broadcast %cst_5 : f32 to vector<16x128xf32>
    %7 = arith.maximumf %5, %6 : vector<16x128xf32>
    %8 = arith.truncf %7 : vector<16x128xf32> to vector<16x128xbf16>
    %c0_6 = arith.constant 0 : index
    %c0_7 = arith.constant 0 : index
    %9 = vector.load %arg3[%c0_6, %c0_7] : memref<128x128xbf16, #tpu.memory_space<vmem>>, vector<128x128xbf16>
    %cst_8 = arith.constant dense<0.000000e+00> : vector<16x128xf32>
    %10 = tpu.matmul %8, %9, %cst_8 {dimension_numbers = #tpu.dot_dimension_numbers<[1], [0], [0], [1], [0, 0, 1, 1], [], []>} : vector<16x128xbf16>, vector<128x128xbf16>, vector<16x128xf32> -> vector<16x128xf32>
    %c1 = arith.constant 1 : index
    %c0_9 = arith.constant 0 : index
    %11 = vector.load %arg6[%c1, %c0_9] : memref<8x128xf32, #tpu.memory_space<vmem>>, vector<1x128xf32>
    %12 = vector.broadcast %11 : vector<1x128xf32> to vector<16x128xf32>
    %13 = arith.addf %10, %12 : vector<16x128xf32>
    %cst_10 = arith.constant 0.000000e+00 : f32
    %14 = vector.broadcast %cst_10 : f32 to vector<16x128xf32>
    %15 = arith.maximumf %13, %14 : vector<16x128xf32>
    %16 = arith.truncf %15 : vector<16x128xf32> to vector<16x128xbf16>
    %c0_11 = arith.constant 0 : index
    %c0_12 = arith.constant 0 : index
    %17 = vector.load %arg4[%c0_11, %c0_12] : memref<128x128xbf16, #tpu.memory_space<vmem>>, vector<128x128xbf16>
    %cst_13 = arith.constant dense<0.000000e+00> : vector<16x128xf32>
    %18 = tpu.matmul %16, %17, %cst_13 {dimension_numbers = #tpu.dot_dimension_numbers<[1], [0], [0], [1], [0, 0, 1, 1], [], []>} : vector<16x128xbf16>, vector<128x128xbf16>, vector<16x128xf32> -> vector<16x128xf32>
    %c2 = arith.constant 2 : index
    %c0_14 = arith.constant 0 : index
    %19 = vector.load %arg6[%c2, %c0_14] : memref<8x128xf32, #tpu.memory_space<vmem>>, vector<1x128xf32>
    %20 = vector.broadcast %19 : vector<1x128xf32> to vector<16x128xf32>
    %21 = arith.addf %18, %20 : vector<16x128xf32>
    %cst_15 = arith.constant 0.000000e+00 : f32
    %22 = vector.broadcast %cst_15 : f32 to vector<16x128xf32>
    %23 = arith.maximumf %21, %22 : vector<16x128xf32>
    %24 = arith.truncf %23 : vector<16x128xf32> to vector<16x128xbf16>
    %c0_16 = arith.constant 0 : index
    %c0_17 = arith.constant 0 : index
    %25 = vector.load %arg5[%c0_16, %c0_17] : memref<128x128xbf16, #tpu.memory_space<vmem>>, vector<128x128xbf16>
    %cst_18 = arith.constant dense<0.000000e+00> : vector<16x128xf32>
    %26 = tpu.matmul %24, %25, %cst_18 {dimension_numbers = #tpu.dot_dimension_numbers<[1], [0], [0], [1], [0, 0, 1, 1], [], []>} : vector<16x128xbf16>, vector<128x128xbf16>, vector<16x128xf32> -> vector<16x128xf32>
    %c3 = arith.constant 3 : index
    %c0_19 = arith.constant 0 : index
    %27 = vector.load %arg6[%c3, %c0_19] : memref<8x128xf32, #tpu.memory_space<vmem>>, vector<1x128xf32>
    %28 = vector.broadcast %27 : vector<1x128xf32> to vector<16x128xf32>
    %29 = arith.addf %26, %28 : vector<16x128xf32>
    %30 = arith.truncf %29 : vector<16x128xf32> to vector<16x128xbf16>
    %c0_20 = arith.constant 0 : index
    %c0_21 = arith.constant 0 : index
    %31 = vector.load %arg7[%c0_20, %c0_21] : memref<16x128xbf16, #tpu.memory_space<vmem>>, vector<16x128xbf16>
    tpu.vector_store %arg7[%c0_20, %c0_21], %30 {strides = array<i32>} : memref<16x128xbf16, #tpu.memory_space<vmem>>, vector<16x128xbf16>,
    return
  }
  func.func @transform_0(%arg0: i32) -> (i32, i32) {
    %c0_i32 = arith.constant 0 : i32
    %c0_i32_0 = arith.constant 0 : i32
    return %arg0, %c0_i32 : i32, i32
  }
  func.func @transform_1(%arg0: i32) -> (i32, i32) {
    %c0_i32 = arith.constant 0 : i32
    %c0_i32_0 = arith.constant 0 : i32
    %c0_i32_1 = arith.constant 0 : i32
    return %c0_i32, %c0_i32_0 : i32, i32
  }
  func.func @transform_2(%arg0: i32) -> (i32, i32) {
    %c0_i32 = arith.constant 0 : i32
    %c0_i32_0 = arith.constant 0 : i32
    %c0_i32_1 = arith.constant 0 : i32
    return %c0_i32, %c0_i32_0 : i32, i32
  }
  func.func @transform_3(%arg0: i32) -> (i32, i32) {
    %c0_i32 = arith.constant 0 : i32
    %c0_i32_0 = arith.constant 0 : i32
    %c0_i32_1 = arith.constant 0 : i32
    return %c0_i32, %c0_i32_0 : i32, i32
  }
  func.func @transform_4(%arg0: i32) -> (i32, i32) {
    %c0_i32 = arith.constant 0 : i32
    %c0_i32_0 = arith.constant 0 : i32
    %c0_i32_1 = arith.constant 0 : i32
    return %c0_i32, %c0_i32_0 : i32, i32
  }
  func.func @transform_5(%arg0: i32) -> (i32, i32) {
    %c0_i32 = arith.constant 0 : i32
    %c0_i32_0 = arith.constant 0 : i32
    %c0_i32_1 = arith.constant 0 : i32
    return %c0_i32, %c0_i32_0 : i32, i32
  }
  func.func @transform_6(%arg0: i32) -> (i32, i32) {
    %c0_i32 = arith.constant 0 : i32
    %c0_i32_0 = arith.constant 0 : i32
    return %arg0, %c0_i32 : i32, i32
  }
}

</mosaic_0001>

<llo_original>
// kernel: tpu_custom_call.1
$region0: #{tpu_custom_call.1}
  #allocation0 [shape = 'u32[]', space=smem, size = 0x4, offset = 0x4, fixed_abs, tag = 'smem constant byte address 0x4 - core index']
  #allocation1 [shape = 'u32[144,128]{1,0:T(1,128)}', space=vmem, size = 0x12000, scoped, tag = 'internal scratch']
  %s0 = inlined_call_operand.hbm [shape: bf16[16,16], index: 0, kind: input, shape index: {}]
  %s1 = inlined_call_operand.hbm [shape: bf16[16,128], index: 1, kind: input, shape index: {}]
  %s2 = inlined_call_operand.hbm [shape: bf16[128,128], index: 2, kind: input, shape index: {}]
  %s3 = inlined_call_operand.hbm [shape: bf16[128,128], index: 3, kind: input, shape index: {}]
  %s4 = inlined_call_operand.hbm [shape: bf16[128,128], index: 4, kind: input, shape index: {}]
  %s5 = inlined_call_operand.vmem [shape: f32[8,128], index: 5, kind: input, shape index: {}]
  %s6 = inlined_call_operand.hbm [shape: bf16[16,128], index: 6, kind: output, shape index: {}]
  %s7 = sld [smem:[#allocation0]]
  $region54: #{tpu_custom_call.1} parent=0
    _
  %s9 = ssub.s32 1, %s7
  %s10 = scalar_select 0, %s9, %s7
  $region1: #{tpu_custom_call.1} parent=0
    #allocation2 [shape = 'u8[4096]{0}', space=vmem, size = 0x1000, scoped, tag = 'input window, operand 0, single buffered']
    #allocation3 [shape = 's32[1]{0}', space=sflag, size = 0x4, scoped, tag = 'scoped memory for tpu_custom_call.1']
    #allocation4 [shape = 's32[1]{0}', space=sflag, size = 0x4, scoped, tag = 'scoped memory for tpu_custom_call.1']
    #allocation5 [shape = 'u8[4096]{0}', space=vmem, size = 0x1000, scoped, tag = 'input window, operand 1, single buffered']
    #allocation6 [shape = 's32[1]{0}', space=sflag, size = 0x4, scoped, tag = 'scoped memory for tpu_custom_call.1']
    #allocation7 [shape = 'u8[32768]{0}', space=vmem, size = 0x8000, scoped, tag = 'input window, operand 2, single buffered']
    #allocation8 [shape = 'u8[32768]{0}', space=vmem, size = 0x8000, scoped, tag = 'input window, operand 3, single buffered']
    #allocation9 [shape = 's32[1]{0}', space=sflag, size = 0x4, scoped, tag = 'scoped memory for tpu_custom_call.1']
    #allocation10 [shape = 'u8[32768]{0}', space=vmem, size = 0x8000, scoped, tag = 'input window, operand 4, single buffered']
    #allocation11 [shape = 'u8[4096]{0}', space=vmem, size = 0x1000, scoped, tag = 'output window, operand 0, single buffered']
    %11 = vsyncpa [#allocation3], 0
    %12 = vsyncpa [#allocation6], 0
    %13 = vsyncpa [#allocation9], 0
    %14 = vsyncpa [#allocation4], 0
    // Predicated region
    $region2: #{tpu_custom_call.1} parent=1 // pred_check
      _
    $region3: #{tpu_custom_call.1} parent=1 // pred_check_branch
      %16 = sbr.rel (0) target = $region5
    $region4: #{tpu_custom_call.1} parent=1 // pred_region
      %s18 = ssub.s32 128, 128
      %19 = vsyncadd [#allocation3], %s18
      %s20 = sshll.u32 [#allocation2], 4
      %s21 = int_to_ptr.vmem [resolvable:$true] %s20
      %26 = dma.hbm_to_vmem [thread:$0]  %s0, 128, %s21, [#allocation3], 64, 64, 4
    $region5: #{tpu_custom_call.1} parent=1 // pred_fallthru
      _
    // Predicated region
    $region6: #{tpu_custom_call.1} parent=1 // pred_check
      _
    $region7: #{tpu_custom_call.1} parent=1 // pred_check_branch
      %28 = sbr.rel (0) target = $region9
    $region8: #{tpu_custom_call.1} parent=1 // pred_region
      %s30 = ssub.s32 128, 128
      %31 = vsyncadd [#allocation6], %s30
      %s32 = sshll.u32 [#allocation5], 4
      %s33 = int_to_ptr.vmem [resolvable:$true] %s32
      %38 = dma.hbm_to_vmem [thread:$0]  %s1, 128, %s33, [#allocation6], 64, 64, 4
    $region9: #{tpu_custom_call.1} parent=1 // pred_fallthru
      _
    // Predicated region
    $region10: #{tpu_custom_call.1} parent=1 // pred_check
      _
    $region11: #{tpu_custom_call.1} parent=1 // pred_check_branch
      %40 = sbr.rel (0) target = $region13
    $region12: #{tpu_custom_call.1} parent=1 // pred_region
      %s42 = ssub.s32 1024, 1024
      %43 = vsyncadd [#allocation6], %s42
      %s44 = sshll.u32 [#allocation7], 4
      %s45 = int_to_ptr.vmem [resolvable:$true] %s44
      %50 = dma.hbm_to_vmem [thread:$0]  %s2, 1024, %s45, [#allocation6], 64, 64, 4
    $region13: #{tpu_custom_call.1} parent=1 // pred_fallthru
      _
    // Predicated region
    $region14: #{tpu_custom_call.1} parent=1 // pred_check
      _
    $region15: #{tpu_custom_call.1} parent=1 // pred_check_branch
      %52 = sbr.rel (0) target = $region17
    $region16: #{tpu_custom_call.1} parent=1 // pred_region
      %s54 = ssub.s32 1024, 1024
      %55 = vsyncadd [#allocation9], %s54
      %s56 = sshll.u32 [#allocation8], 4
      %s57 = int_to_ptr.vmem [resolvable:$true] %s56
      %62 = dma.hbm_to_vmem [thread:$0]  %s3, 1024, %s57, [#allocation9], 64, 64, 4
    $region17: #{tpu_custom_call.1} parent=1 // pred_fallthru
      _
    // Predicated region
    $region18: #{tpu_custom_call.1} parent=1 // pred_check
      _
    $region19: #{tpu_custom_call.1} parent=1 // pred_check_branch
      %64 = sbr.rel (0) target = $region21
    $region20: #{tpu_custom_call.1} parent=1 // pred_region
      %s66 = ssub.s32 1024, 1024
      %67 = vsyncadd [#allocation9], %s66
      %s68 = sshll.u32 [#allocation10], 4
      %s69 = int_to_ptr.vmem [resolvable:$true] %s68
      %74 = dma.hbm_to_vmem [thread:$0]  %s4, 1024, %s69, [#allocation9], 64, 64, 4
    $region21: #{tpu_custom_call.1} parent=1 // pred_fallthru
      _
    // Predicated region
    $region22: #{tpu_custom_call.1} parent=1 // pred_check
      _
    $region23: #{tpu_custom_call.1} parent=1 // pred_check_branch
      %76 = sbr.rel (0) target = $region25
    $region24: #{tpu_custom_call.1} parent=1 // pred_region
      _
    $region25: #{tpu_custom_call.1} parent=1 // pred_fallthru
      _
    // Predicated region
    $region26: #{tpu_custom_call.1} parent=1 // pred_check
      _
    $region27: #{tpu_custom_call.1} parent=1 // pred_check_branch
      %78 = sbr.rel (0) target = $region29
    $region28: #{tpu_custom_call.1} parent=1 // pred_region
      %79 = dma.done [#allocation3], 128
    $region29: #{tpu_custom_call.1} parent=1 // pred_fallthru
      _
    // Predicated region
    $region30: #{tpu_custom_call.1} parent=1 // pred_check
      _
    $region31: #{tpu_custom_call.1} parent=1 // pred_check_branch
      %81 = sbr.rel (0) target = $region33
    $region32: #{tpu_custom_call.1} parent=1 // pred_region
      %82 = dma.done [#allocation6], 128
    $region33: #{tpu_custom_call.1} parent=1 // pred_fallthru
      _
    // Predicated region
    $region34: #{tpu_custom_call.1} parent=1 // pred_check
      _
    $region35: #{tpu_custom_call.1} parent=1 // pred_check_branch
      %84 = sbr.rel (0) target = $region37
    $region36: #{tpu_custom_call.1} parent=1 // pred_region
      %85 = dma.done [#allocation6], 1024
    $region37: #{tpu_custom_call.1} parent=1 // pred_fallthru
      _
    // Predicated region
    $region38: #{tpu_custom_call.1} parent=1 // pred_check
      _
    $region39: #{tpu_custom_call.1} parent=1 // pred_check_branch
      %87 = sbr.rel (0) target = $region41
    $region40: #{tpu_custom_call.1} parent=1 // pred_region
      %88 = dma.done [#allocation9], 1024
    $region41: #{tpu_custom_call.1} parent=1 // pred_fallthru
      _
    // Predicated region
    $region42: #{tpu_custom_call.1} parent=1 // pred_check
      _
    $region43: #{tpu_custom_call.1} parent=1 // pred_check_branch
      %90 = sbr.rel (0) target = $region45
    $region44: #{tpu_custom_call.1} parent=1 // pred_region
      %91 = dma.done [#allocation9], 1024
    $region45: #{tpu_custom_call.1} parent=1 // pred_fallthru
      _
    %v93 = vld [vmem:[#allocation2] sm:$0xf]
    %v94 = vld [vmem:[#allocation2 + $0x4] sm:$0xf]
    %v95 = vld [vmem:[#allocation5] sm:$0xf]
    %v96 = vld [vmem:[#allocation5 + $0x4] sm:$0xf]
    %v97 = vld [vmem:[%s5] sm:$0x1]
    %v98 = vlaneseq
    %v99 = vshrl.u32 %v98, 7
    %v100 = vsub.s32 0, %v99
    %v101 = vrot.slane %v97, %v100
    %v104 = vunpack.c.l.b16 %v93
    %v105 = vunpack.c.l.b16 %v94
    %v106 = vpack.c.b16 %v105, %v104
    %v109 = vunpack.c.l.b16 %v95
    %v110 = vunpack.c.l.b16 %v96
    %v111 = vpack.c.b16 %v110, %v109
    %vm113 = vcmask 130048
    %v115 = vsel %vm113, %v106, 0
    %117 = vmatprep.subr.bf16.mxu0 0
    %118 = vmatpush1.bf16.msra.mxu0 %v111
    %119 = vmatprep.subr.bf16.mxu0 0
    %120 = vmatpush1.bf16.msra.mxu0 0
    %121 = vmatprep.subr.bf16.mxu0 0
    %122 = vmatpush1.bf16.msra.mxu0 0
    %123 = vmatprep.subr.bf16.mxu0 0
    %124 = vmatpush1.bf16.msra.mxu0 0
    %125 = vmatprep.subr.bf16.mxu0 0
    %126 = vmatpush1.bf16.msra.mxu0 0
    %127 = vmatprep.subr.bf16.mxu0 0
    %128 = vmatpush1.bf16.msra.mxu0 0
    %129 = vmatprep.subr.bf16.mxu0 0
    %130 = vmatpush1.bf16.msra.mxu0 0
    %131 = vmatprep.subr.bf16.mxu0 0
    %132 = vmatpush1.bf16.msra.mxu0 0
    %133 = vmatprep.subr.bf16.mxu0 0
    %134 = vmatpush1.bf16.msra.mxu0 0
    %135 = vmatprep.subr.bf16.mxu0 0
    %136 = vmatpush1.bf16.msra.mxu0 0
    %137 = vmatprep.subr.bf16.mxu0 0
    %138 = vmatpush1.bf16.msra.mxu0 0
    %139 = vmatprep.subr.bf16.mxu0 0
    %140 = vmatpush1.bf16.msra.mxu0 0
    %141 = vmatprep.subr.bf16.mxu0 0
    %142 = vmatpush1.bf16.msra.mxu0 0
    %143 = vmatprep.subr.bf16.mxu0 0
    %144 = vmatpush1.bf16.msra.mxu0 0
    %145 = vmatprep.subr.bf16.mxu0 0
    %146 = vmatpush1.bf16.msra.mxu0 0
    %147 = vmatprep.subr.bf16.mxu0 0
    %148 = vmatpush1.bf16.msra.mxu0 0
    %149 = vmatprep.mubr.bf16.mxu0 0
    %150 = vmatmul.mubr.bf16.gmra.mrb[0].mxu0 %v115
    %v151 = vpop.f32.mrb[0].mxu0
    %v152 = vadd.f32 %v101, %v151
    %v153 = vpop.f32.mrb[0].mxu0
    %v154 = vpop.f32.mrb[0].mxu0
    %v155 = vadd.f32 %v101, %v154
    %v156 = vpop.f32.mrb[0].mxu0
    %157 = vdwg.mxu0
    %v158 = vmax.f32 %v152, 0.0
    %v159 = vmax.f32 %v155, 0.0
    %v160 = vpack.c.bf16 %v159, %v158
    %v161 = vld [vmem:[#allocation7] sm:$0xf]
    %v162 = vld [vmem:[#allocation7 + $0x4] sm:$0xf]
    %v163 = vld [vmem:[#allocation7 + $0x8] sm:$0xf]
    %v164 = vld [vmem:[#allocation7 + $0xc] sm:$0xf]
    %v165 = vld [vmem:[#allocation7 + $0x10] sm:$0xf]
    %v166 = vld [vmem:[#allocation7 + $0x14] sm:$0xf]
    %v167 = vld [vmem:[#allocation7 + $0x18] sm:$0xf]
    %v168 = vld [vmem:[#allocation7 + $0x1c] sm:$0xf]
    %v169 = vld [vmem:[#allocation7 + $0x20] sm:$0xf]
    %v170 = vld [vmem:[#allocation7 + $0x24] sm:$0xf]
    %v171 = vld [vmem:[#allocation7 + $0x28] sm:$0xf]
    %v172 = vld [vmem:[#allocation7 + $0x2c] sm:$0xf]
    %v173 = vld [vmem:[#allocation7 + $0x30] sm:$0xf]
    %v174 = vld [vmem:[#allocation7 + $0x34] sm:$0xf]
    %v175 = vld [vmem:[#allocation7 + $0x38] sm:$0xf]
    %v176 = vld [vmem:[#allocation7 + $0x3c] sm:$0xf]
    %v177 = vld [vmem:[%s5 + $0x1] sm:$0x1]
    %v178 = vlaneseq
    %v179 = vshrl.u32 %v178, 7
    %v180 = vsub.s32 0, %v179
    %v181 = vrot.slane %v177, %v180
    %v198 = vunpack.c.l.b16 %v161
    %v199 = vunpack.c.l.b16 %v162
    %v200 = vunpack.c.l.b16 %v163
    %v201 = vunpack.c.l.b16 %v164
    %v202 = vunpack.c.l.b16 %v165
    %v203 = vunpack.c.l.b16 %v166
    %v204 = vunpack.c.l.b16 %v167
    %v205 = vunpack.c.l.b16 %v168
    %v206 = vunpack.c.l.b16 %v169
    %v207 = vunpack.c.l.b16 %v170
    %v208 = vunpack.c.l.b16 %v171
    %v209 = vunpack.c.l.b16 %v172
    %v210 = vunpack.c.l.b16 %v173
    %v211 = vunpack.c.l.b16 %v174
    %v212 = vunpack.c.l.b16 %v175
    %v213 = vunpack.c.l.b16 %v176
    %v214 = vpack.c.b16 %v199, %v198
    %v215 = vpack.c.b16 %v201, %v200
    %v216 = vpack.c.b16 %v203, %v202
    %v217 = vpack.c.b16 %v205, %v204
    %v218 = vpack.c.b16 %v207, %v206
    %v219 = vpack.c.b16 %v209, %v208
    %v220 = vpack.c.b16 %v211, %v210
    %v221 = vpack.c.b16 %v213, %v212
    %230 = vmatprep.subr.bf16.mxu0 0
    %231 = vmatpush1.bf16.msra.mxu0 %v214
    %232 = vmatprep.subr.bf16.mxu0 0
    %233 = vmatpush1.bf16.msra.mxu0 %v215
    %234 = vmatprep.subr.bf16.mxu0 0
    %235 = vmatpush1.bf16.msra.mxu0 %v216
    %236 = vmatprep.subr.bf16.mxu0 0
    %237 = vmatpush1.bf16.msra.mxu0 %v217
    %238 = vmatprep.subr.bf16.mxu0 0
    %239 = vmatpush1.bf16.msra.mxu0 %v218
    %240 = vmatprep.subr.bf16.mxu0 0
    %241 = vmatpush1.bf16.msra.mxu0 %v219
    %242 = vmatprep.subr.bf16.mxu0 0
    %243 = vmatpush1.bf16.msra.mxu0 %v220
    %244 = vmatprep.subr.bf16.mxu0 0
    %245 = vmatpush1.bf16.msra.mxu0 %v221
    %246 = vmatprep.subr.bf16.mxu0 0
    %247 = vmatpush1.bf16.msra.mxu0 0
    %248 = vmatprep.subr.bf16.mxu0 0
    %249 = vmatpush1.bf16.msra.mxu0 0
    %250 = vmatprep.subr.bf16.mxu0 0
    %251 = vmatpush1.bf16.msra.mxu0 0
    %252 = vmatprep.subr.bf16.mxu0 0
    %253 = vmatpush1.bf16.msra.mxu0 0
    %254 = vmatprep.subr.bf16.mxu0 0
    %255 = vmatpush1.bf16.msra.mxu0 0
    %256 = vmatprep.subr.bf16.mxu0 0
    %257 = vmatpush1.bf16.msra.mxu0 0
    %258 = vmatprep.subr.bf16.mxu0 0
    %259 = vmatpush1.bf16.msra.mxu0 0
    %260 = vmatprep.subr.bf16.mxu0 0
    %261 = vmatpush1.bf16.msra.mxu0 0
    %262 = vmatprep.mubr.bf16.mxu0 0
    %263 = vmatmul.mubr.bf16.gmra.mrb[0].mxu0 %v160
    %v264 = vpop.f32.mrb[0].mxu0
    %v265 = vadd.f32 %v181, %v264
    %v266 = vpop.f32.mrb[0].mxu0
    %v267 = vpop.f32.mrb[0].mxu0
    %v268 = vadd.f32 %v181, %v267
    %v269 = vpop.f32.mrb[0].mxu0
    %270 = vdwg.mxu0
    %v271 = vmax.f32 %v265, 0.0
    %v272 = vmax.f32 %v268, 0.0
    %v273 = vpack.c.bf16 %v272, %v271
    %v274 = vld [vmem:[#allocation8] sm:$0xf]
    %v275 = vld [vmem:[#allocation8 + $0x4] sm:$0xf]
    %v276 = vld [vmem:[#allocation8 + $0x8] sm:$0xf]
    %v277 = vld [vmem:[#allocation8 + $0xc] sm:$0xf]
    %v278 = vld [vmem:[#allocation8 + $0x10] sm:$0xf]
    %v279 = vld [vmem:[#allocation8 + $0x14] sm:$0xf]
    %v280 = vld [vmem:[#allocation8 + $0x18] sm:$0xf]
    %v281 = vld [vmem:[#allocation8 + $0x1c] sm:$0xf]
    %v282 = vld [vmem:[#allocation8 + $0x20] sm:$0xf]
    %v283 = vld [vmem:[#allocation8 + $0x24] sm:$0xf]
    %v284 = vld [vmem:[#allocation8 + $0x28] sm:$0xf]
    %v285 = vld [vmem:[#allocation8 + $0x2c] sm:$0xf]
    %v286 = vld [vmem:[#allocation8 + $0x30] sm:$0xf]
    %v287 = vld [vmem:[#allocation8 + $0x34] sm:$0xf]
    %v288 = vld [vmem:[#allocation8 + $0x38] sm:$0xf]
    %v289 = vld [vmem:[#allocation8 + $0x3c] sm:$0xf]
    %v290 = vld [vmem:[%s5 + $0x2] sm:$0x1]
    %v291 = vlaneseq
    %v292 = vshrl.u32 %v291, 7
    %v293 = vsub.s32 0, %v292
    %v294 = vrot.slane %v290, %v293
    %v311 = vunpack.c.l.b16 %v274
    %v312 = vunpack.c.l.b16 %v275
    %v313 = vunpack.c.l.b16 %v276
    %v314 = vunpack.c.l.b16 %v277
    %v315 = vunpack.c.l.b16 %v278
    %v316 = vunpack.c.l.b16 %v279
    %v317 = vunpack.c.l.b16 %v280
    %v318 = vunpack.c.l.b16 %v281
    %v319 = vunpack.c.l.b16 %v282
    %v320 = vunpack.c.l.b16 %v283
    %v321 = vunpack.c.l.b16 %v284
    %v322 = vunpack.c.l.b16 %v285
    %v323 = vunpack.c.l.b16 %v286
    %v324 = vunpack.c.l.b16 %v287
    %v325 = vunpack.c.l.b16 %v288
    %v326 = vunpack.c.l.b16 %v289
    %v327 = vpack.c.b16 %v312, %v311
    %v328 = vpack.c.b16 %v314, %v313
    %v329 = vpack.c.b16 %v316, %v315
    %v330 = vpack.c.b16 %v318, %v317
    %v331 = vpack.c.b16 %v320, %v319
    %v332 = vpack.c.b16 %v322, %v321
    %v333 = vpack.c.b16 %v324, %v323
    %v334 = vpack.c.b16 %v326, %v325
    %343 = vmatprep.subr.bf16.mxu0 0
    %344 = vmatpush1.bf16.msra.mxu0 %v327
    %345 = vmatprep.subr.bf16.mxu0 0
    %346 = vmatpush1.bf16.msra.mxu0 %v328
    %347 = vmatprep.subr.bf16.mxu0 0
    %348 = vmatpush1.bf16.msra.mxu0 %v329
    %349 = vmatprep.subr.bf16.mxu0 0
    %350 = vmatpush1.bf16.msra.mxu0 %v330
    %351 = vmatprep.subr.bf16.mxu0 0
    %352 = vmatpush1.bf16.msra.mxu0 %v331
    %353 = vmatprep.subr.bf16.mxu0 0
    %354 = vmatpush1.bf16.msra.mxu0 %v332
    %355 = vmatprep.subr.bf16.mxu0 0
    %356 = vmatpush1.bf16.msra.mxu0 %v333
    %357 = vmatprep.subr.bf16.mxu0 0
    %358 = vmatpush1.bf16.msra.mxu0 %v334
    %359 = vmatprep.subr.bf16.mxu0 0
    %360 = vmatpush1.bf16.msra.mxu0 0
    %361 = vmatprep.subr.bf16.mxu0 0
    %362 = vmatpush1.bf16.msra.mxu0 0
    %363 = vmatprep.subr.bf16.mxu0 0
    %364 = vmatpush1.bf16.msra.mxu0 0
    %365 = vmatprep.subr.bf16.mxu0 0
    %366 = vmatpush1.bf16.msra.mxu0 0
    %367 = vmatprep.subr.bf16.mxu0 0
    %368 = vmatpush1.bf16.msra.mxu0 0
    %369 = vmatprep.subr.bf16.mxu0 0
    %370 = vmatpush1.bf16.msra.mxu0 0
    %371 = vmatprep.subr.bf16.mxu0 0
    %372 = vmatpush1.bf16.msra.mxu0 0
    %373 = vmatprep.subr.bf16.mxu0 0
    %374 = vmatpush1.bf16.msra.mxu0 0
    %375 = vmatprep.mubr.bf16.mxu0 0
    %376 = vmatmul.mubr.bf16.gmra.mrb[0].mxu0 %v273
    %v377 = vpop.f32.mrb[0].mxu0
    %v378 = vadd.f32 %v294, %v377
    %v379 = vpop.f32.mrb[0].mxu0
    %v380 = vpop.f32.mrb[0].mxu0
    %v381 = vadd.f32 %v294, %v380
    %v382 = vpop.f32.mrb[0].mxu0
    %383 = vdwg.mxu0
    %v384 = vmax.f32 %v378, 0.0
    %v385 = vmax.f32 %v381, 0.0
    %v386 = vpack.c.bf16 %v385, %v384
    %v387 = vld [vmem:[#allocation10] sm:$0xf]
    %v388 = vld [vmem:[#allocation10 + $0x4] sm:$0xf]
    %v389 = vld [vmem:[#allocation10 + $0x8] sm:$0xf]
    %v390 = vld [vmem:[#allocation10 + $0xc] sm:$0xf]
    %v391 = vld [vmem:[#allocation10 + $0x10] sm:$0xf]
    %v392 = vld [vmem:[#allocation10 + $0x14] sm:$0xf]
    %v393 = vld [vmem:[#allocation10 + $0x18] sm:$0xf]
    %v394 = vld [vmem:[#allocation10 + $0x1c] sm:$0xf]
    %v395 = vld [vmem:[#allocation10 + $0x20] sm:$0xf]
    %v396 = vld [vmem:[#allocation10 + $0x24] sm:$0xf]
    %v397 = vld [vmem:[#allocation10 + $0x28] sm:$0xf]
    %v398 = vld [vmem:[#allocation10 + $0x2c] sm:$0xf]
    %v399 = vld [vmem:[#allocation10 + $0x30] sm:$0xf]
    %v400 = vld [vmem:[#allocation10 + $0x34] sm:$0xf]
    %v401 = vld [vmem:[#allocation10 + $0x38] sm:$0xf]
    %v402 = vld [vmem:[#allocation10 + $0x3c] sm:$0xf]
    %v403 = vld [vmem:[%s5 + $0x3] sm:$0x1]
    %v404 = vlaneseq
    %v405 = vshrl.u32 %v404, 7
    %v406 = vsub.s32 0, %v405
    %v407 = vrot.slane %v403, %v406
    %v424 = vunpack.c.l.b16 %v387
    %v425 = vunpack.c.l.b16 %v388
    %v426 = vunpack.c.l.b16 %v389
    %v427 = vunpack.c.l.b16 %v390
    %v428 = vunpack.c.l.b16 %v391
    %v429 = vunpack.c.l.b16 %v392
    %v430 = vunpack.c.l.b16 %v393
    %v431 = vunpack.c.l.b16 %v394
    %v432 = vunpack.c.l.b16 %v395
    %v433 = vunpack.c.l.b16 %v396
    %v434 = vunpack.c.l.b16 %v397
    %v435 = vunpack.c.l.b16 %v398
    %v436 = vunpack.c.l.b16 %v399
    %v437 = vunpack.c.l.b16 %v400
    %v438 = vunpack.c.l.b16 %v401
    %v439 = vunpack.c.l.b16 %v402
    %v440 = vpack.c.b16 %v425, %v424
    %v441 = vpack.c.b16 %v427, %v426
    %v442 = vpack.c.b16 %v429, %v428
    %v443 = vpack.c.b16 %v431, %v430
    %v444 = vpack.c.b16 %v433, %v432
    %v445 = vpack.c.b16 %v435, %v434
    %v446 = vpack.c.b16 %v437, %v436
    %v447 = vpack.c.b16 %v439, %v438
    %456 = vmatprep.subr.bf16.mxu0 0
    %457 = vmatpush1.bf16.msra.mxu0 %v440
    %458 = vmatprep.subr.bf16.mxu0 0
    %459 = vmatpush1.bf16.msra.mxu0 %v441
    %460 = vmatprep.subr.bf16.mxu0 0
    %461 = vmatpush1.bf16.msra.mxu0 %v442
    %462 = vmatprep.subr.bf16.mxu0 0
    %463 = vmatpush1.bf16.msra.mxu0 %v443
    %464 = vmatprep.subr.bf16.mxu0 0
    %465 = vmatpush1.bf16.msra.mxu0 %v444
    %466 = vmatprep.subr.bf16.mxu0 0
    %467 = vmatpush1.bf16.msra.mxu0 %v445
    %468 = vmatprep.subr.bf16.mxu0 0
    %469 = vmatpush1.bf16.msra.mxu0 %v446
    %470 = vmatprep.subr.bf16.mxu0 0
    %471 = vmatpush1.bf16.msra.mxu0 %v447
    %472 = vmatprep.subr.bf16.mxu0 0
    %473 = vmatpush1.bf16.msra.mxu0 0
    %474 = vmatprep.subr.bf16.mxu0 0
    %475 = vmatpush1.bf16.msra.mxu0 0
    %476 = vmatprep.subr.bf16.mxu0 0
    %477 = vmatpush1.bf16.msra.mxu0 0
    %478 = vmatprep.subr.bf16.mxu0 0
    %479 = vmatpush1.bf16.msra.mxu0 0
    %480 = vmatprep.subr.bf16.mxu0 0
    %481 = vmatpush1.bf16.msra.mxu0 0
    %482 = vmatprep.subr.bf16.mxu0 0
    %483 = vmatpush1.bf16.msra.mxu0 0
    %484 = vmatprep.subr.bf16.mxu0 0
    %485 = vmatpush1.bf16.msra.mxu0 0
    %486 = vmatprep.subr.bf16.mxu0 0
    %487 = vmatpush1.bf16.msra.mxu0 0
    %488 = vmatprep.mubr.bf16.mxu0 0
    %489 = vmatmul.mubr.bf16.gmra.mrb[0].mxu0 %v386
    %v490 = vpop.f32.mrb[0].mxu0
    %v491 = vadd.f32 %v407, %v490
    %v492 = vpop.f32.mrb[0].mxu0
    %v493 = vpop.f32.mrb[0].mxu0
    %v494 = vadd.f32 %v407, %v493
    %v495 = vpop.f32.mrb[0].mxu0
    %496 = vdwg.mxu0
    %v497 = vpack.c.bf16 %v494, %v491
    %v499 = vunpack.c.l.b16 %v497
    %v500 = vunpack.c.h.b16 %v497
    %v501 = vpack.c.b16 %v499, %v499
    %v502 = vpack.c.b16 %v500, %v500
    %505 = vst [vmem:[#allocation11] sm:$0xf] %v501
    %506 = vst [vmem:[#allocation11 + $0x4] sm:$0xf] %v502
    // Predicated region
    $region46: #{tpu_custom_call.1} parent=1 // pred_check
      _
    $region47: #{tpu_custom_call.1} parent=1 // pred_check_branch
      %508 = sbr.rel (0) target = $region49
    $region48: #{tpu_custom_call.1} parent=1 // pred_region
      %s510 = ssub.s32 128, 128
      %511 = vsyncadd [#allocation4], %s510
      %s512 = sshll.u32 [#allocation11], 4
      %s513 = int_to_ptr.vmem [resolvable:$true] %s512
      %518 = dma.vmem_to_hbm [thread:$0]  %s513, 128, %s6, [#allocation4], 64, 64, 4
    $region49: #{tpu_custom_call.1} parent=1 // pred_fallthru
      _
    // Predicated region
    $region50: #{tpu_custom_call.1} parent=1 // pred_check
      _
    $region51: #{tpu_custom_call.1} parent=1 // pred_check_branch
      %520 = sbr.rel (0) target = $region53
    $region52: #{tpu_custom_call.1} parent=1 // pred_region
      %521 = dma.done [#allocation4], 128
    $region53: #{tpu_custom_call.1} parent=1 // pred_fallthru
      _
    %522 = vsyncpa [#allocation3], 1
    %523 = vsyncpa [#allocation6], 1
    %524 = vsyncpa [#allocation9], 1
    %525 = vsyncpa [#allocation4], 1

</llo_original>
